<compile_context>
chip_gen: v7x
topology: tpu7x:2x2x1
jax: 0.10.0
libtpu: 0.0.40
codegen_flags: <defaults>
</compile_context>

<pallas_src>
import functools

import jax
import jax.numpy as jnp
from jax.experimental import pallas as pl
from jax.experimental.pallas import tpu as pltpu


_LANE = 128                 # vreg lane width
_MAX_FOLDED_LANES = 512     # cap on the folded (time-groups * channels) lane width


def _vmem_info():
    """(vmem_limit_bytes, target_block_bytes) — chip aware, with safe fallback."""
    try:
        info = pltpu.get_tpu_info()
        cap = int(getattr(info, "vmem_capacity_bytes", 64 << 20))
    except Exception:   # pragma: no cover - conservative fallback off-TPU
        cap = 64 << 20
    limit = min(max(cap // 2, 16 << 20), 64 << 20)            # 32 MiB on v7x, 64 MiB v5e/v6e
    target = (4 << 20) if cap >= (96 << 20) else (2 << 20)    # bigger blocks where VMEM allows
    return limit, target


def _fold_groups(L, C):
    """Largest divisor G of L with G*C <= cap; folds G time steps into lanes
    so small channel counts still use dense vregs / dense DMA lanes."""
    if C >= _LANE or L <= 1:
        return 1
    best = 1
    for d in range(2, min(L, _MAX_FOLDED_LANES // C) + 1):
        if L % d == 0:
            best = d
    return best


def _choose_tiles(B, Lw, Cw, groups, itemsize, target_bytes, vmem_budget):
    """Pick (TB, TC) for a (B, Lw, Cw) work array."""
    # Channel tile: full Cw when folded / small / already fits; else 128-multiples.
    if groups > 1 or Cw < _LANE or Lw * Cw * 4 <= target_bytes:
        TC = Cw
    else:
        k = max(1, min(Cw // _LANE, target_bytes // max(1, Lw * _LANE * 4)))
        TC = k * _LANE

    row_elems = Lw * TC
    row_io = row_elems * itemsize
    row_f32 = row_elems * 4
    # double-buffered in + out plus ~3 f32 full-tile temporaries
    row_cost = 4 * row_io + 3 * row_f32
    if row_cost > vmem_budget:
        # TODO(synk): implement an L-split reduction grid axis ("arbitrary") with a
        # (TB, 1, TC) accumulator for extreme sequence lengths; gated for now.
        raise NotImplementedError(
            "RevIN Pallas kernel: sequence too long for a single (L, C) block; "
            "an L-split reduction is required for this shape.")

    TB = max(1, min(B, vmem_budget // row_cost, max(1, target_bytes // max(1, row_io))))
    # Keep the batch grid axis >= 2 steps (v7x megacore + DMA/compute overlap),
    # and prefer >= 8 total steps when blocks stay big enough to amortize overhead.
    if B >= 2 and TB >= B:
        TB = (B + 1) // 2
    if B >= 8:
        tb8 = max(1, B // 8)
        if tb8 * row_io >= (512 << 10):
            TB = min(TB, tb8)
    return TB, TC


# ---------------------------------------------------------------------------
# Kernels
# ---------------------------------------------------------------------------
def _revin_norm_kernel(*refs, eps, affine, seq_len, groups):
    if groups > 1:
        x_ref, fold_ref, w_ref, b_ref, y_ref, stats_ref = refs
    else:
        x_ref, w_ref, b_ref, y_ref, stats_ref = refs
        fold_ref = None

    x = x_ref[...].astype(jnp.float32)                        # (TB, Lw, TC)

    # Pass 1: per-channel sums. Time lives on the sublane axis and, when folded,
    # is also interleaved along lanes with period C.
    s1 = jnp.sum(x, axis=1)                                   # (TB, TC)
    if groups > 1:
        # The fold matmul both reduces over the `groups` lane-interleaved time
        # groups AND broadcasts the per-channel result back to every lane slot,
        # on the otherwise idle MXU.
        s1 = jnp.dot(s1, fold_ref[...], preferred_element_type=jnp.float32)
    mean2 = s1 / float(seq_len)                               # (TB, TC)

    # Pass 2: biased variance (matches torch.var(unbiased=False)); two-pass form
    # avoids cancellation, and xc is reused for the output sweep below.
    xc = x - mean2[:, None, :]                                # (TB, Lw, TC)
    s2 = jnp.sum(xc * xc, axis=1)                             # (TB, TC)
    if groups > 1:
        s2 = jnp.dot(s2, fold_ref[...], preferred_element_type=jnp.float32)
    var2 = s2 / float(seq_len)
    std2 = jnp.sqrt(var2 + eps)                               # (TB, TC)
    inv_std2 = 1.0 / std2                                     # per-channel divides only

    if affine:
        w = w_ref[...].astype(jnp.float32)                    # (1, TC)
        b = b_ref[...].astype(jnp.float32)                    # (1, TC)
        scale2 = inv_std2 * w                                 # (TB, TC)
    else:
        b = None
        scale2 = inv_std2

    if y_ref.dtype == jnp.float32:
        y = xc * scale2[:, None, :]
        if affine:
            y = y + b[:, None, :]
        y_ref[...] = y
    else:
        # bf16/fp16 I/O: run the big sweep in the native dtype (packed VALU on
        # v6e/v7x) by folding the mean into the shift; stats stay f32.
        shift2 = -mean2 * scale2
        if affine:
            shift2 = shift2 + b
        xd = x_ref[...]
        y_ref[...] = (xd * scale2.astype(xd.dtype)[:, None, :]
                      + shift2.astype(xd.dtype)[:, None, :]).astype(y_ref.dtype)

    # Single combined stats store: row 0 = mean, row 1 = std.
    stats_ref[...] = jnp.concatenate(
        [mean2[:, None, :], std2[:, None, :]], axis=1).astype(stats_ref.dtype)


def _revin_denorm_kernel(x_ref, stats_ref, w_ref, b_ref, y_ref, *, eps, affine):
    stats = stats_ref[...].astype(jnp.float32)                # (TB, 2, TC)
    mean = stats[:, 0:1, :]                                   # (TB, 1, TC)
    std = stats[:, 1:2, :]                                    # (TB, 1, TC)

    if affine:
        w = w_ref[...][:, None, :].astype(jnp.float32)        # (1, 1, TC)
        b = b_ref[...][:, None, :].astype(jnp.float32)        # (1, 1, TC)
        # Per-channel folding of: (x - b) / (w + eps^2) * std + mean
        # (eps*eps matches the PyTorch reference — intentional, do not change).
        s = std / (w + eps * eps)                             # (TB, 1, TC)
        t = mean - b * s                                      # (TB, 1, TC)
    else:
        s = std
        t = mean

    xd = x_ref[...]
    if xd.dtype == jnp.float32:
        y_ref[...] = xd * s + t
    else:
        y_ref[...] = (xd * s.astype(xd.dtype) + t.astype(xd.dtype)).astype(y_ref.dtype)


# ---------------------------------------------------------------------------
# Wrappers
# ---------------------------------------------------------------------------
@functools.partial(jax.jit, static_argnames=("eps", "affine"))
def revin_norm(x, weight, bias, *, eps=1e-5, affine=True):
    """Returns (normalized_x, mean, stdev). x: (B, L, C)."""
    B, L, C = x.shape
    vmem_limit, target = _vmem_info()
    vmem_budget = (vmem_limit * 3) // 4

    G = _fold_groups(L, C)
    Lw, Cw = L // G, G * C
    # Contiguous trailing-dim reshape: free (no transpose, no copy).
    xw = x.reshape(B, Lw, Cw) if G > 1 else x

    w = jnp.asarray(weight, jnp.float32).reshape(C)
    b = jnp.asarray(bias, jnp.float32).reshape(C)
    if G > 1:
        w = jnp.tile(w, G)
        b = jnp.tile(b, G)
    w2 = w.reshape(1, Cw)
    b2 = b.reshape(1, Cw)

    TB, TC = _choose_tiles(B, Lw, Cw, G, x.dtype.itemsize, target, vmem_budget)
    grid = (pl.cdiv(B, TB), pl.cdiv(Cw, TC))

    in_specs = [pl.BlockSpec((TB, Lw, TC), lambda bb, cc: (bb, 0, cc))]
    inputs = [xw]
    if G > 1:
        lane_ch = jnp.arange(Cw) % C
        fold = (lane_ch[:, None] == lane_ch[None, :]).astype(jnp.float32)   # (Cw, Cw)
        in_specs.append(pl.BlockSpec((Cw, Cw), lambda bb, cc: (0, 0)))
        inputs.append(fold)
    in_specs += [pl.BlockSpec((1, TC), lambda bb, cc: (0, cc)),
                 pl.BlockSpec((1, TC), lambda bb, cc: (0, cc))]
    inputs += [w2, b2]

    kernel = functools.partial(_revin_norm_kernel, eps=eps, affine=affine,
                               seq_len=L, groups=G)
    y, stats = pl.pallas_call(
        kernel,
        out_shape=(
            jax.ShapeDtypeStruct((B, Lw, Cw), x.dtype),
            jax.ShapeDtypeStruct((B, 2, Cw), jnp.float32),
        ),
        grid_spec=pltpu.PrefetchScalarGridSpec(
            num_scalar_prefetch=0,
            grid=grid,
            in_specs=in_specs,
            out_specs=(
                pl.BlockSpec((TB, Lw, TC), lambda bb, cc: (bb, 0, cc)),
                pl.BlockSpec((TB, 2, TC), lambda bb, cc: (bb, 0, cc)),
            ),
        ),
        compiler_params=pltpu.CompilerParams(
            dimension_semantics=("parallel", "parallel"),
            vmem_limit_bytes=vmem_limit,
        ),
    )(*inputs)

    if G > 1:
        y = y.reshape(B, L, C)          # free reshape back
    mean = stats[:, 0:1, :C]            # per-channel stats (replicated lanes sliced off)
    std = stats[:, 1:2, :C]
    return y, mean, std


@functools.partial(jax.jit, static_argnames=("eps", "affine"))
def revin_denorm(x, mean, std, weight, bias, *, eps=1e-5, affine=True):
    """Inverse transform. x: (B, L, C), mean/std: (B, 1, C)."""
    B, L, C = x.shape
    vmem_limit, target = _vmem_info()
    vmem_budget = (vmem_limit * 3) // 4

    G = _fold_groups(L, C)
    Lw, Cw = L // G, G * C
    xw = x.reshape(B, Lw, Cw) if G > 1 else x

    mean2 = jnp.asarray(mean, jnp.float32).reshape(B, C)
    std2 = jnp.asarray(std, jnp.float32).reshape(B, C)
    w = jnp.asarray(weight, jnp.float32).reshape(C)
    b = jnp.asarray(bias, jnp.float32).reshape(C)
    if G > 1:
        mean2 = jnp.tile(mean2, (1, G))
        std2 = jnp.tile(std2, (1, G))
        w = jnp.tile(w, G)
        b = jnp.tile(b, G)
    stats = jnp.stack([mean2, std2], axis=1)                  # (B, 2, Cw), tiny
    w2 = w.reshape(1, Cw)
    b2 = b.reshape(1, Cw)

    TB, TC = _choose_tiles(B, Lw, Cw, G, x.dtype.itemsize, target, vmem_budget)
    grid = (pl.cdiv(B, TB), pl.cdiv(Cw, TC))

    kernel = functools.partial(_revin_denorm_kernel, eps=eps, affine=affine)
    y = pl.pallas_call(
        kernel,
        out_shape=jax.ShapeDtypeStruct((B, Lw, Cw), x.dtype),
        grid_spec=pltpu.PrefetchScalarGridSpec(
            num_scalar_prefetch=0,
            grid=grid,
            in_specs=[
                pl.BlockSpec((TB, Lw, TC), lambda bb, cc: (bb, 0, cc)),
                pl.BlockSpec((TB, 2, TC), lambda bb, cc: (bb, 0, cc)),
                pl.BlockSpec((1, TC), lambda bb, cc: (0, cc)),
                pl.BlockSpec((1, TC), lambda bb, cc: (0, cc)),
            ],
            out_specs=pl.BlockSpec((TB, Lw, TC), lambda bb, cc: (bb, 0, cc)),
        ),
        compiler_params=pltpu.CompilerParams(
            dimension_semantics=("parallel", "parallel"),
            vmem_limit_bytes=vmem_limit,
        ),
    )(xw, stats, w2, b2)

    if G > 1:
        y = y.reshape(B, L, C)
    return y


class RevIN:
    """JAX/Pallas port of the PyTorch RevIN module (subtract_last=False)."""

    # TODO(synk): subtract_last=True path (subtract x[:, -1, :]) not wired into
    # the kernels; the reference module defaults to subtract_last=False.

    def __init__(self, num_features: int, eps=1e-5, affine=True):
        self.num_features = num_features
        self.eps = eps
        self.affine = affine
        # Deterministic init, matching nn.Parameter(torch.ones/zeros).
        self.affine_weight = jnp.ones((num_features,), dtype=jnp.float32)
        self.affine_bias = jnp.zeros((num_features,), dtype=jnp.float32)
        self.mean = None
        self.stdev = None

    def __call__(self, x, mode: str):
        if mode == "norm":
            y, mean, std = revin_norm(x, self.affine_weight, self.affine_bias,
                                      eps=self.eps, affine=self.affine)
            self.mean = mean
            self.stdev = std
            return y
        elif mode == "denorm":
            return revin_denorm(x, self.mean, self.stdev, self.affine_weight,
                                self.affine_bias, eps=self.eps,
                                affine=self.affine)
        else:
            raise NotImplementedError


# ---------------------------------------------------------------------------
# Demo / smoke test
# ---------------------------------------------------------------------------
if __name__ == "__main__":
    def _reference(x, w, b, eps):
        mean = jnp.mean(x, axis=1, keepdims=True)
        std = jnp.sqrt(jnp.var(x, axis=1, keepdims=True) + eps)   # biased (ddof=0)
        y = (x - mean) / std * w + b
        return y, mean, std

    # Case 1: tiny channel count -> folded (lane-densified) path.
    B, L, C = 2, 8, 4
    key = jax.random.PRNGKey(0)
    x = jax.random.normal(key, (B, L, C), dtype=jnp.float32) * 3.0 + 1.5

    revin = RevIN(num_features=C, eps=1e-5, affine=True)
    y = jax.block_until_ready(revin(x, "norm"))
    x_rec = jax.block_until_ready(revin(y, "denorm"))

    y_ref, m_ref, s_ref = _reference(x, revin.affine_weight, revin.affine_bias, 1e-5)
    assert y.shape == (B, L, C)
    assert revin.mean.shape == (B, 1, C) and revin.stdev.shape == (B, 1, C)
    assert jnp.allclose(y, y_ref, atol=1e-5, rtol=1e-5), "norm mismatch"
    assert jnp.allclose(revin.mean, m_ref, atol=1e-5, rtol=1e-5), "mean mismatch"
    assert jnp.allclose(revin.stdev, s_ref, atol=1e-5, rtol=1e-5), "std mismatch"
    assert jnp.allclose(x_rec, x, atol=1e-4, rtol=1e-4), "denorm round-trip mismatch"

    # Case 2: wide channels + ragged batch tiling -> direct (unfolded) path.
    B2, L2, C2 = 3, 16, 192
    x2 = jax.random.normal(jax.random.PRNGKey(1), (B2, L2, C2), jnp.float32) * 0.5 - 2.0
    revin2 = RevIN(num_features=C2, eps=1e-5, affine=True)
    y2 = jax.block_until_ready(revin2(x2, "norm"))
    x2_rec = jax.block_until_ready(revin2(y2, "denorm"))

    y2_ref, m2_ref, s2_ref = _reference(x2, revin2.affine_weight, revin2.affine_bias, 1e-5)
    assert jnp.allclose(y2, y2_ref, atol=1e-5, rtol=1e-5), "wide norm mismatch"
    assert jnp.allclose(revin2.mean, m2_ref, atol=1e-5, rtol=1e-5), "wide mean mismatch"
    assert jnp.allclose(revin2.stdev, s2_ref, atol=1e-5, rtol=1e-5), "wide std mismatch"
    assert jnp.allclose(x2_rec, x2, atol=1e-4, rtol=1e-4), "wide round-trip mismatch"

    print("KERNEL_OK")
</pallas_src>

<mosaic_0001>
module attributes {stable_mosaic.version = 11 : i64} {
  func.func @_revin_norm_kernel(%arg0: i32, %arg1: i32, %arg2: memref<1x1x32xf32, #tpu.memory_space<vmem>>, %arg3: memref<32x32xf32, #tpu.memory_space<vmem>>, %arg4: memref<1x32xf32, #tpu.memory_space<vmem>>, %arg5: memref<1x32xf32, #tpu.memory_space<vmem>>, %arg6: memref<1x1x32xf32, #tpu.memory_space<vmem>>, %arg7: memref<1x2x32xf32, #tpu.memory_space<vmem>>) attributes {dimension_semantics = [#tpu.dimension_semantics<parallel>, #tpu.dimension_semantics<parallel>], iteration_bounds = array<i64: 2, 1>, scalar_prefetch = 0 : i64, scratch_operands = 0 : i64, tpu.core_type = #tpu.core_type<tc>, window_params = [{transform_indices = @transform_0, window_bounds = array<i64: 1, 1, 32>}, {pipeline_mode = #tpu.pipeline_mode<synchronous>, transform_indices = @transform_1, window_bounds = array<i64: 32, 32>}, {transform_indices = @transform_2, window_bounds = array<i64: 1, 32>}, {transform_indices = @transform_3, window_bounds = array<i64: 1, 32>}, {transform_indices = @transform_4, window_bounds = array<i64: 1, 1, 32>}, {transform_indices = @transform_5, window_bounds = array<i64: 1, 2, 32>}]} {
    %c0 = arith.constant 0 : index
    %c0_0 = arith.constant 0 : index
    %c0_1 = arith.constant 0 : index
    %0 = vector.load %arg2[%c0, %c0_0, %c0_1] : memref<1x1x32xf32, #tpu.memory_space<vmem>>, vector<1x1x32xf32>
    %cst = arith.constant dense<0.000000e+00> : vector<1x32xf32>
    %1 = vector.multi_reduction <add>, %0, %cst [1] : vector<1x1x32xf32> to vector<1x32xf32>
    %c0_2 = arith.constant 0 : index
    %c0_3 = arith.constant 0 : index
    %2 = vector.load %arg3[%c0_2, %c0_3] : memref<32x32xf32, #tpu.memory_space<vmem>>, vector<32x32xf32>
    %cst_4 = arith.constant dense<0.000000e+00> : vector<1x32xf32>
    %3 = tpu.matmul %1, %2, %cst_4 {dimension_numbers = #tpu.dot_dimension_numbers<[1], [0], [0], [1], [0, 0, 1, 1], [], []>} : vector<1x32xf32>, vector<32x32xf32>, vector<1x32xf32> -> vector<1x32xf32>
    %cst_5 = arith.constant 8.000000e+00 : f32
    %4 = vector.broadcast %cst_5 : f32 to vector<1x32xf32>
    %5 = arith.divf %3, %4 : vector<1x32xf32>
    %6 = vector.shape_cast %5 : vector<1x32xf32> to vector<1x1x32xf32>
    %7 = arith.subf %0, %6 : vector<1x1x32xf32>
    %8 = arith.mulf %7, %7 : vector<1x1x32xf32>
    %cst_6 = arith.constant dense<0.000000e+00> : vector<1x32xf32>
    %9 = vector.multi_reduction <add>, %8, %cst_6 [1] : vector<1x1x32xf32> to vector<1x32xf32>
    %c0_7 = arith.constant 0 : index
    %c0_8 = arith.constant 0 : index
    %10 = vector.load %arg3[%c0_7, %c0_8] : memref<32x32xf32, #tpu.memory_space<vmem>>, vector<32x32xf32>
    %cst_9 = arith.constant dense<0.000000e+00> : vector<1x32xf32>
    %11 = tpu.matmul %9, %10, %cst_9 {dimension_numbers = #tpu.dot_dimension_numbers<[1], [0], [0], [1], [0, 0, 1, 1], [], []>} : vector<1x32xf32>, vector<32x32xf32>, vector<1x32xf32> -> vector<1x32xf32>
    %cst_10 = arith.constant 8.000000e+00 : f32
    %12 = vector.broadcast %cst_10 : f32 to vector<1x32xf32>
    %13 = arith.divf %11, %12 : vector<1x32xf32>
    %cst_11 = arith.constant 9.99999974E-6 : f32
    %14 = vector.broadcast %cst_11 : f32 to vector<1x32xf32>
    %15 = arith.addf %13, %14 : vector<1x32xf32>
    %16 = math.sqrt %15 : vector<1x32xf32>
    %cst_12 = arith.constant 1.000000e+00 : f32
    %17 = vector.broadcast %cst_12 : f32 to vector<1x32xf32>
    %18 = arith.divf %17, %16 : vector<1x32xf32>
    %c0_13 = arith.constant 0 : index
    %c0_14 = arith.constant 0 : index
    %19 = vector.load %arg4[%c0_13, %c0_14] : memref<1x32xf32, #tpu.memory_space<vmem>>, vector<1x32xf32>
    %c0_15 = arith.constant 0 : index
    %c0_16 = arith.constant 0 : index
    %20 = vector.load %arg5[%c0_15, %c0_16] : memref<1x32xf32, #tpu.memory_space<vmem>>, vector<1x32xf32>
    %21 = arith.mulf %18, %19 : vector<1x32xf32>
    %22 = vector.shape_cast %21 : vector<1x32xf32> to vector<1x1x32xf32>
    %23 = arith.mulf %7, %22 : vector<1x1x32xf32>
    %24 = vector.shape_cast %20 : vector<1x32xf32> to vector<1x1x32xf32>
    %25 = arith.addf %23, %24 : vector<1x1x32xf32>
    %c0_17 = arith.constant 0 : index
    %c0_18 = arith.constant 0 : index
    %c0_19 = arith.constant 0 : index
    %26 = vector.load %arg6[%c0_17, %c0_18, %c0_19] : memref<1x1x32xf32, #tpu.memory_space<vmem>>, vector<1x1x32xf32>
    tpu.vector_store %arg6[%c0_17, %c0_18, %c0_19], %25 {strides = array<i32>} : memref<1x1x32xf32, #tpu.memory_space<vmem>>, vector<1x1x32xf32>,
    %27 = vector.shape_cast %5 : vector<1x32xf32> to vector<1x1x32xf32>
    %28 = vector.shape_cast %16 : vector<1x32xf32> to vector<1x1x32xf32>
    %29 = tpu.concatenate %27, %28 in 1 : vector<1x1x32xf32>, vector<1x1x32xf32> -> vector<1x2x32xf32>
    %c0_20 = arith.constant 0 : index
    %c0_21 = arith.constant 0 : index
    %c0_22 = arith.constant 0 : index
    %30 = vector.load %arg7[%c0_20, %c0_21, %c0_22] : memref<1x2x32xf32, #tpu.memory_space<vmem>>, vector<1x2x32xf32>
    tpu.vector_store %arg7[%c0_20, %c0_21, %c0_22], %29 {strides = array<i32>} : memref<1x2x32xf32, #tpu.memory_space<vmem>>, vector<1x2x32xf32>,
    return
  }
  func.func @transform_0(%arg0: i32, %arg1: i32) -> (i32, i32, i32) {
    %c0_i32 = arith.constant 0 : i32
    %c0_i32_0 = arith.constant 0 : i32
    return %arg0, %c0_i32, %arg1 : i32, i32, i32
  }
  func.func @transform_1(%arg0: i32, %arg1: i32) -> (i32, i32) {
    %c0_i32 = arith.constant 0 : i32
    %c0_i32_0 = arith.constant 0 : i32
    %c0_i32_1 = arith.constant 0 : i32
    return %c0_i32, %c0_i32_0 : i32, i32
  }
  func.func @transform_2(%arg0: i32, %arg1: i32) -> (i32, i32) {
    %c0_i32 = arith.constant 0 : i32
    %c0_i32_0 = arith.constant 0 : i32
    return %c0_i32, %arg1 : i32, i32
  }
  func.func @transform_3(%arg0: i32, %arg1: i32) -> (i32, i32) {
    %c0_i32 = arith.constant 0 : i32
    %c0_i32_0 = arith.constant 0 : i32
    return %c0_i32, %arg1 : i32, i32
  }
  func.func @transform_4(%arg0: i32, %arg1: i32) -> (i32, i32, i32) {
    %c0_i32 = arith.constant 0 : i32
    %c0_i32_0 = arith.constant 0 : i32
    return %arg0, %c0_i32, %arg1 : i32, i32, i32
  }
  func.func @transform_5(%arg0: i32, %arg1: i32) -> (i32, i32, i32) {
    %c0_i32 = arith.constant 0 : i32
    %c0_i32_0 = arith.constant 0 : i32
    return %arg0, %c0_i32, %arg1 : i32, i32, i32
  }
}

</mosaic_0001>

<llo_original>
// kernel: tile.13
$region0: #{tile.13}
  #allocation0 [shape = 's32[1]{0}', space=sflag, size = 0x4, scoped, tag = 'scoped memory for tile.13']
  %s0 = inlined_call_operand.vmem [shape: f32[4], index: 0, kind: input, shape index: {}]
  %s1 = inlined_call_operand.vmem [shape: f32[8,4], index: 1, kind: output, shape index: {}]
  // Predicated region
  $region2: #{tile.13} parent=0 // pred_check
    _
  $region3: #{tile.13} parent=0 // pred_check_branch
    %3 = sbr.rel (0) target = $region5
  $region4: #{tile.13} parent=0 // pred_region
    _
  $region5: #{tile.13} parent=0 // pred_fallthru
    _
  %v4 = vld [vmem:[%s0] ss:$0 sm:$0xff]
  %5 = vst [vmem:[%s1] sm:$0xff] %v4

// kernel: tile.18
$region0: #{tile.18}
  %s0 = inlined_call_operand.vmem [shape: f32[8,4], index: 0, kind: input, shape index: {}]
  %s1 = inlined_call_operand.vmem [shape: f32[1,32], index: 1, kind: output, shape index: {}]
  $region1: #{tile.18} parent=0
    #allocation0 [shape = 'u8[4096]{0}', space=vmem, size = 0x1000, scoped, tag = 'scoped mem for output reshape']
    %v2 = vld [vmem:[%s0] sm:$0x1]
    %vm3 = vcmask 31744
    %4 = vst.msk [vmem:[#allocation0] sm:$0x1] %vm3, %v2
    %s5 = scalar_lea.vmem %s0, 7
    %v6 = vld [vmem:[%s5] sm:$0x1]
    %7 = vrot.lane.b32.xlu0 %v6, 28
    %v8 = vpop.permute.xlu0 %7
    %vm9 = vcmask 261344
    %10 = vst.msk [vmem:[#allocation0] sm:$0x1] %vm9, %v8
    %s11 = scalar_lea.vmem %s0, 6
    %v12 = vld [vmem:[%s11] sm:$0x1]
    %13 = vrot.lane.b32.xlu0 %v12, 24
    %v14 = vpop.permute.xlu0 %13
    %vm15 = vcmask 228544
    %16 = vst.msk [vmem:[#allocation0] sm:$0x1] %vm15, %v14
    %s17 = scalar_lea.vmem %s0, 5
    %v18 = vld [vmem:[%s17] sm:$0x1]
    %19 = vrot.lane.b32.xlu0 %v18, 20
    %v20 = vpop.permute.xlu0 %19
    %vm21 = vcmask 195744
    %22 = vst.msk [vmem:[#allocation0] sm:$0x1] %vm21, %v20
    %s23 = scalar_lea.vmem %s0, 4
    %v24 = vld [vmem:[%s23] sm:$0x1]
    %25 = vrot.lane.b32.xlu0 %v24, 16
    %v26 = vpop.permute.xlu0 %25
    %vm27 = vcmask 162944
    %28 = vst.msk [vmem:[#allocation0] sm:$0x1] %vm27, %v26
    %s29 = scalar_lea.vmem %s0, 3
    %v30 = vld [vmem:[%s29] sm:$0x1]
    %31 = vrot.lane.b32.xlu0 %v30, 12
    %v32 = vpop.permute.xlu0 %31
    %vm33 = vcmask 130144
    %34 = vst.msk [vmem:[#allocation0] sm:$0x1] %vm33, %v32
    %s35 = scalar_lea.vmem %s0, 2
    %v36 = vld [vmem:[%s35] sm:$0x1]
    %37 = vrot.lane.b32.xlu0 %v36, 8
    %v38 = vpop.permute.xlu0 %37
    %vm39 = vcmask 97344
    %40 = vst.msk [vmem:[#allocation0] sm:$0x1] %vm39, %v38
    %s41 = scalar_lea.vmem %s0, 1
    %v42 = vld [vmem:[%s41] sm:$0x1]
    %43 = vrot.lane.b32.xlu0 %v42, 4
    %v44 = vpop.permute.xlu0 %43
    %vm45 = vcmask 64544
    %46 = vst.msk [vmem:[#allocation0] sm:$0x1] %vm45, %v44
    %s48 = sshllo.u32 0, 1
    %v50 = vld [vmem:[#allocation0] sm:%s48]
    %s51 = sshllo.u32 0, 1
    %52 = vst [vmem:[%s1] sm:%s51] %v50

// kernel: revin_norm.1
$region0: #{revin_norm.1}
  #allocation0 [shape = 'u32[]', space=smem, size = 0x4, offset = 0x4, fixed_abs, tag = 'smem constant byte address 0x4 - core index']
  #allocation1 [shape = 'u32[144,128]{1,0:T(1,128)}', space=vmem, size = 0x12000, scoped, tag = 'internal scratch']
  %s0 = inlined_call_operand.vmem [shape: f32[2,1,32], index: 0, kind: input, shape index: {}]
  %s1 = inlined_call_operand.vmem [shape: f32[32,32], index: 1, kind: input, shape index: {}]
  %s2 = inlined_call_operand.vmem [shape: f32[1,32], index: 2, kind: input, shape index: {}]
  %s3 = inlined_call_operand.vmem [shape: f32[1,32], index: 3, kind: input, shape index: {}]
  %s4 = inlined_call_operand.vmem [shape: f32[2,1,32], index: 4, kind: output, shape index: {0}]
  %s5 = inlined_call_operand.vmem [shape: f32[2,2,32], index: 5, kind: output, shape index: {1}]
  %6 = xla_tuple %s4, %s5
  %s7 = sld [smem:[#allocation0]]
  $region57: #{revin_norm.1} parent=0
    _
  %s9 = ssub.s32 1, %s7
  %s10 = scalar_select 0, %s9, %s7
  loop: start=0, step=1, limit=4
  $region2: #{revin_norm.1} parent=0 // loop_pre_header
    _
  $region3: #{revin_norm.1} parent=0 // loop_header
    %s12 = sphi 0, %s16
    %p13 = scmp.ge.s32.totalorder %s12, 4
    %s19 = sphi 0, %s31
    %s20 = sphi 0, %s27
    %s21 = sphi 0, %s19
    %s22 = sphi 0, %s20
    %s23 = sphi 0, %s21
    %s24 = sphi 0, %s22
    %s36 = sphi 0, %s38
    %s39 = sphi 0, %s36
    %s40 = sphi 0, %s39
    %s56 = sphi 0, %s40
    %s60 = sphi 0, %s60
    %s62 = sphi 0, %s60
    %s63 = sphi 0, %s62
    %s77 = sphi 0, %s63
    %s83 = sphi 0, %s85
    %s86 = sphi 0, %s83
    %s87 = sphi 0, %s86
    %s103 = sphi 0, %s87
    %s109 = sphi 0, %s111
    %s112 = sphi 0, %s109
    %s113 = sphi 0, %s112
    %s129 = sphi 0, %s113
    %s137 = sphi 0, %s139
    %s140 = sphi 0, %s137
    %s141 = sphi 0, %s140
    %s157 = sphi 0, %s141
    %s165 = sphi 0, %s167
    %s168 = sphi 0, %s165
    %s169 = sphi 0, %s168
    %s185 = sphi 0, %s169
  $region4: #{revin_norm.1} parent=0 // loop_header_branch
    %15 = sbr.rel (%p13) target = $region8
  $region5: #{revin_norm.1} parent=0 // loop_body
    %s17 = ssub.s32 %s12, 1
    %s18 = ssub.s32 %s12, 2
    %s25 = sadd.s32 1, %s20
    %p26 = scmp.ge.s32.totalorder %s25, 1
    %s27 = scalar_select %p26, 0, %s25
    %s28 = sadd.s32 1, %s19
    %s29 = scalar_select %p26, %s28, %s19
    %p30 = scmp.ge.s32.totalorder %s29, 2
    %s31 = scalar_select %p30, 0, %s29
    %s32 = ssub.s32 %s19, %s31
    %s33 = ssub.s32 %s20, %s27
    %s34 = sor.u32 %s32, %s33
    %p35 = scmp.eq.s32.totalorder %s34, 0
    %s37 = sadd.s32 %s36, 1
    %s38 = scalar_select %p35, %s36, %s37
    %p41 = pneg %p35
    %p42 = scmp.eq.s32.totalorder %s12, 1
    %p43 = por %p41, %p42
    %p44 = scmp.ne.s32.totalorder %s36, %s39
    %p45 = scmp.eq.s32.totalorder %s12, 0
    %p46 = por %p44, %p45
    %p47 = scmp.ne.s32.totalorder %s36, %s39
    %p48 = scmp.eq.s32.totalorder %s17, 1
    %p49 = por %p47, %p48
    %p50 = scmp.ne.s32.totalorder %s39, %s40
    %p51 = scmp.eq.s32.totalorder %s17, 0
    %p52 = por %p50, %p51
    %p53 = scmp.ne.s32.totalorder %s39, %s40
    %p54 = scmp.eq.s32.totalorder %s18, 1
    %p55 = por %p53, %p54
    %p57 = scmp.ne.s32.totalorder %s40, %s56
    %p58 = scmp.eq.s32.totalorder %s18, 0
    %p59 = por %p57, %p58
    %s61 = sadd.s32 %s60, 1
    %p64 = scmp.eq.s32.totalorder %s12, 1
    %p65 = scmp.ne.s32.totalorder %s60, %s62
    %p66 = scmp.eq.s32.totalorder %s12, 0
    %p67 = por %p65, %p66
    %p68 = scmp.ne.s32.totalorder %s60, %s62
    %p69 = scmp.eq.s32.totalorder %s17, 1
    %p70 = por %p68, %p69
    %p71 = scmp.ne.s32.totalorder %s62, %s63
    %p72 = scmp.eq.s32.totalorder %s17, 0
    %p73 = por %p71, %p72
    %p74 = scmp.ne.s32.totalorder %s62, %s63
    %p75 = scmp.eq.s32.totalorder %s18, 1
    %p76 = por %p74, %p75
    %p78 = scmp.ne.s32.totalorder %s63, %s77
    %p79 = scmp.eq.s32.totalorder %s18, 0
    %p80 = por %p78, %p79
    %s81 = ssub.s32 %s20, %s27
    %p82 = scmp.eq.s32.totalorder %s81, 0
    %s84 = sadd.s32 %s83, 1
    %s85 = scalar_select %p82, %s83, %s84
    %p88 = pneg %p82
    %p89 = scmp.eq.s32.totalorder %s12, 1
    %p90 = por %p88, %p89
    %p91 = scmp.ne.s32.totalorder %s83, %s86
    %p92 = scmp.eq.s32.totalorder %s12, 0
    %p93 = por %p91, %p92
    %p94 = scmp.ne.s32.totalorder %s83, %s86
    %p95 = scmp.eq.s32.totalorder %s17, 1
    %p96 = por %p94, %p95
    %p97 = scmp.ne.s32.totalorder %s86, %s87
    %p98 = scmp.eq.s32.totalorder %s17, 0
    %p99 = por %p97, %p98
    %p100 = scmp.ne.s32.totalorder %s86, %s87
    %p101 = scmp.eq.s32.totalorder %s18, 1
    %p102 = por %p100, %p101
    %p104 = scmp.ne.s32.totalorder %s87, %s103
    %p105 = scmp.eq.s32.totalorder %s18, 0
    %p106 = por %p104, %p105
    %s107 = ssub.s32 %s20, %s27
    %p108 = scmp.eq.s32.totalorder %s107, 0
    %s110 = sadd.s32 %s109, 1
    %s111 = scalar_select %p108, %s109, %s110
    %p114 = pneg %p108
    %p115 = scmp.eq.s32.totalorder %s12, 1
    %p116 = por %p114, %p115
    %p117 = scmp.ne.s32.totalorder %s109, %s112
    %p118 = scmp.eq.s32.totalorder %s12, 0
    %p119 = por %p117, %p118
    %p120 = scmp.ne.s32.totalorder %s109, %s112
    %p121 = scmp.eq.s32.totalorder %s17, 1
    %p122 = por %p120, %p121
    %p123 = scmp.ne.s32.totalorder %s112, %s113
    %p124 = scmp.eq.s32.totalorder %s17, 0
    %p125 = por %p123, %p124
    %p126 = scmp.ne.s32.totalorder %s112, %s113
    %p127 = scmp.eq.s32.totalorder %s18, 1
    %p128 = por %p126, %p127
    %p130 = scmp.ne.s32.totalorder %s113, %s129
    %p131 = scmp.eq.s32.totalorder %s18, 0
    %p132 = por %p130, %p131
    %s133 = ssub.s32 %s19, %s31
    %s134 = ssub.s32 %s20, %s27
    %s135 = sor.u32 %s133, %s134
    %p136 = scmp.eq.s32.totalorder %s135, 0
    %s138 = sadd.s32 %s137, 1
    %s139 = scalar_select %p136, %s137, %s138
    %p142 = pneg %p136
    %p143 = scmp.eq.s32.totalorder %s12, 1
    %p144 = por %p142, %p143
    %p145 = scmp.ne.s32.totalorder %s137, %s140
    %p146 = scmp.eq.s32.totalorder %s12, 0
    %p147 = por %p145, %p146
    %p148 = scmp.ne.s32.totalorder %s137, %s140
    %p149 = scmp.eq.s32.totalorder %s17, 1
    %p150 = por %p148, %p149
    %p151 = scmp.ne.s32.totalorder %s140, %s141
    %p152 = scmp.eq.s32.totalorder %s17, 0
    %p153 = por %p151, %p152
    %p154 = scmp.ne.s32.totalorder %s140, %s141
    %p155 = scmp.eq.s32.totalorder %s18, 1
    %p156 = por %p154, %p155
    %p158 = scmp.ne.s32.totalorder %s141, %s157
    %p159 = scmp.eq.s32.totalorder %s18, 0
    %p160 = por %p158, %p159
    %s161 = ssub.s32 %s19, %s31
    %s162 = ssub.s32 %s20, %s27
    %s163 = sor.u32 %s161, %s162
    %p164 = scmp.eq.s32.totalorder %s163, 0
    %s166 = sadd.s32 %s165, 1
    %s167 = scalar_select %p164, %s165, %s166
    %p170 = pneg %p164
    %p171 = scmp.eq.s32.totalorder %s12, 1
    %p172 = por %p170, %p171
    %p173 = scmp.ne.s32.totalorder %s165, %s168
    %p174 = scmp.eq.s32.totalorder %s12, 0
    %p175 = por %p173, %p174
    %p176 = scmp.ne.s32.totalorder %s165, %s168
    %p177 = scmp.eq.s32.totalorder %s17, 1
    %p178 = por %p176, %p177
    %p179 = scmp.ne.s32.totalorder %s168, %s169
    %p180 = scmp.eq.s32.totalorder %s17, 0
    %p181 = por %p179, %p180
    %p182 = scmp.ne.s32.totalorder %s168, %s169
    %p183 = scmp.eq.s32.totalorder %s18, 1
    %p184 = por %p182, %p183
    %p186 = scmp.ne.s32.totalorder %s169, %s185
    %p187 = scmp.eq.s32.totalorder %s18, 0
    %p188 = por %p186, %p187
    %p189 = scmp.le.s32.totalorder 1, %s12
    %p190 = scmp.lt.s32.totalorder %s12, 3
    %p191 = pnand %p189, %p190
    %p192 = pneg %p191
    // Predicated region
    $region9: #{revin_norm.1} parent=5 // pred_check
      _
    $region10: #{revin_norm.1} parent=5 // pred_check_branch
      %194 = sbr.rel (%p191) target = $region12
    $region11: #{revin_norm.1} parent=5 // pred_region
      %s195 = ssub.s32 %s12, 1
      // Predicated region
      $region13: #{revin_norm.1} parent=11 // pred_check
        %p196 = pneg %p73
      $region14: #{revin_norm.1} parent=11 // pred_check_branch
        %198 = sbr.rel (%p196) target = $region16
      $region15: #{revin_norm.1} parent=11 // pred_region
        _
      $region16: #{revin_norm.1} parent=11 // pred_fallthru
        _
      // Predicated region
      $region17: #{revin_norm.1} parent=11 // pred_check
        %p199 = pneg %p99
      $region18: #{revin_norm.1} parent=11 // pred_check_branch
        %201 = sbr.rel (%p199) target = $region20
      $region19: #{revin_norm.1} parent=11 // pred_region
        %p202 = scmp.lt.s32.totalorder %s22, 0
        %s203 = scalar_select %p202, %s22, 0
        %s204 = scalar_lea.vmem %s2, %s203
      $region20: #{revin_norm.1} parent=11 // pred_fallthru
        _
      // Predicated region
      $region21: #{revin_norm.1} parent=11 // pred_check
        %p205 = pneg %p125
      $region22: #{revin_norm.1} parent=11 // pred_check_branch
        %207 = sbr.rel (%p205) target = $region24
      $region23: #{revin_norm.1} parent=11 // pred_region
        %p208 = scmp.lt.s32.totalorder %s22, 0
        %s209 = scalar_select %p208, %s22, 0
        %s210 = scalar_lea.vmem %s3, %s209
      $region24: #{revin_norm.1} parent=11 // pred_fallthru
        _
    $region12: #{revin_norm.1} parent=5 // pred_fallthru
      _
    %p211 = scmp.lt.s32.totalorder %s12, 2
    // Predicated region
    $region25: #{revin_norm.1} parent=5 // pred_check
      %p212 = pneg %p211
    $region26: #{revin_norm.1} parent=5 // pred_check_branch
      %214 = sbr.rel (%p212) target = $region28
    $region27: #{revin_norm.1} parent=5 // pred_region
      // Predicated region
      $region29: #{revin_norm.1} parent=27 // pred_check
        %p215 = pneg %p46
      $region30: #{revin_norm.1} parent=27 // pred_check_branch
        %217 = sbr.rel (%p215) target = $region32
      $region31: #{revin_norm.1} parent=27 // pred_region
        %p218 = scmp.lt.s32.totalorder %s19, 1
        %s219 = scalar_select %p218, %s19, 1
        %p220 = scmp.lt.s32.totalorder %s20, 0
        %s221 = scalar_select %p220, %s20, 0
        %s222 = sadd.s32 %s221, %s219
        %s223 = scalar_lea.vmem %s0, %s222
      $region32: #{revin_norm.1} parent=27 // pred_fallthru
        _
    $region28: #{revin_norm.1} parent=5 // pred_fallthru
      _
    %p224 = scmp.le.s32.totalorder 1, %s12
    %p225 = scmp.lt.s32.totalorder %s12, 3
    %p226 = pnand %p224, %p225
    %p227 = pneg %p226
    // Predicated region
    $region33: #{revin_norm.1} parent=5 // pred_check
      _
    $region34: #{revin_norm.1} parent=5 // pred_check_branch
      %229 = sbr.rel (%p226) target = $region36
    $region35: #{revin_norm.1} parent=5 // pred_region
      %s230 = ssub.s32 %s12, 1
      %p231 = scmp.lt.s32.totalorder %s21, 1
      %s232 = scalar_select %p231, %s21, 1
      %p233 = scmp.lt.s32.totalorder %s22, 0
      %s234 = scalar_select %p233, %s22, 0
      %s235 = sadd.s32 %s234, %s232
      %s236 = scalar_lea.vmem %s0, %s235
      %p237 = pneg %p52
      %p238 = pneg %p49
      %p239 = pneg %p73
      %p240 = pneg %p70
      %p241 = scmp.lt.s32.totalorder %s22, 0
      %s242 = scalar_select %p241, %s22, 0
      %s243 = scalar_lea.vmem %s2, %s242
      %p244 = pneg %p99
      %p245 = pneg %p96
      %p246 = scmp.lt.s32.totalorder %s22, 0
      %s247 = scalar_select %p246, %s22, 0
      %s248 = scalar_lea.vmem %s3, %s247
      %p249 = pneg %p125
      %p250 = pneg %p122
      %p251 = pneg %p153
      %p252 = pneg %p150
      %p253 = scmp.lt.s32.totalorder %s21, 1
      %s254 = scalar_select %p253, %s21, 1
      %p255 = scmp.lt.s32.totalorder %s22, 0
      %s256 = scalar_select %p255, %s22, 0
      %s257 = sadd.s32 %s256, %s254
      %s258 = scalar_lea.vmem %s4, %s257
      %p259 = pneg %p181
      %p260 = pneg %p178
      %p261 = scmp.lt.s32.totalorder %s21, 1
      %s262 = scalar_select %p261, %s21, 1
      %p263 = scmp.lt.s32.totalorder %s22, 0
      %s264 = scalar_select %p263, %s22, 0
      %s265 = sadd.s32 %s264, %s262
      %s266 = smul.addr %s265, 2
      %s267 = scalar_lea.vmem %s5, %s266
      %p268 = scmp.lt.s32.totalorder %s21, 1
      %s269 = scalar_select %p268, %s21, 1
      %p270 = scmp.lt.s32.totalorder %s22, 0
      %s271 = scalar_select %p270, %s22, 0
      %s272 = sadd.s32 %s271, %s269
      %s273 = scalar_lea.vmem %s0, %s272
      %p274 = scmp.lt.s32.totalorder %s22, 0
      %s275 = scalar_select %p274, %s22, 0
      %s276 = scalar_lea.vmem %s2, %s275
      %p277 = scmp.lt.s32.totalorder %s22, 0
      %s278 = scalar_select %p277, %s22, 0
      %s279 = scalar_lea.vmem %s3, %s278
      %p280 = scmp.lt.s32.totalorder %s21, 1
      %s281 = scalar_select %p280, %s21, 1
      %p282 = scmp.lt.s32.totalorder %s22, 0
      %s283 = scalar_select %p282, %s22, 0
      %s284 = sadd.s32 %s283, %s281
      %s285 = scalar_lea.vmem %s4, %s284
      %p286 = scmp.lt.s32.totalorder %s21, 1
      %s287 = scalar_select %p286, %s21, 1
      %p288 = scmp.lt.s32.totalorder %s22, 0
      %s289 = scalar_select %p288, %s22, 0
      %s290 = sadd.s32 %s289, %s287
      %s291 = smul.addr %s290, 2
      %s292 = scalar_lea.vmem %s5, %s291
      %v293 = vld [vmem:[%s273] sm:$0x1]
      %v294 = vadd.f32 %v293, 0.0
      %v295 = vld [vmem:[%s1] sm:$0xff]
      %v296 = vld [vmem:[%s1 + $0x8] sm:$0xff]
      %v297 = vld [vmem:[%s1 + $0x10] sm:$0xff]
      %v298 = vld [vmem:[%s1 + $0x18] sm:$0xff]
      %vm299 = vcmask 261120
      %v301 = vsel %vm299, %v294, 0
      %303 = vmatprep.subr.mxu0 0.0
      %304 = vmatpush1.msra.mxu0 %v295
      %305 = vmatprep.subr.mxu0 0.0
      %306 = vmatpush1.msra.mxu0 %v296
      %307 = vmatprep.subr.mxu0 0.0
      %308 = vmatpush1.msra.mxu0 %v297
      %309 = vmatprep.subr.mxu0 0.0
      %310 = vmatpush1.msra.mxu0 %v298
      %311 = vmatprep.subr.mxu0 0.0
      %312 = vmatpush1.msra.mxu0 0.0
      %313 = vmatprep.subr.mxu0 0.0
      %314 = vmatpush1.msra.mxu0 0.0
      %315 = vmatprep.subr.mxu0 0.0
      %316 = vmatpush1.msra.mxu0 0.0
      %317 = vmatprep.subr.mxu0 0.0
      %318 = vmatpush1.msra.mxu0 0.0
      %319 = vmatprep.subr.mxu0 0.0
      %320 = vmatpush1.msra.mxu0 0.0
      %321 = vmatprep.subr.mxu0 0.0
      %322 = vmatpush1.msra.mxu0 0.0
      %323 = vmatprep.subr.mxu0 0.0
      %324 = vmatpush1.msra.mxu0 0.0
      %325 = vmatprep.subr.mxu0 0.0
      %326 = vmatpush1.msra.mxu0 0.0
      %327 = vmatprep.subr.mxu0 0.0
      %328 = vmatpush1.msra.mxu0 0.0
      %329 = vmatprep.subr.mxu0 0.0
      %330 = vmatpush1.msra.mxu0 0.0
      %331 = vmatprep.subr.mxu0 0.0
      %332 = vmatpush1.msra.mxu0 0.0
      %333 = vmatprep.subr.mxu0 0.0
      %334 = vmatpush1.msra.mxu0 0.0
      %335 = vmatprep.subr.mxu0 0.0
      %336 = vmatpush1.msra.mxu0 0.0
      %337 = vmatprep.subr.mxu0 0.0
      %338 = vmatpush1.msra.mxu0 0.0
      %339 = vmatprep.subr.mxu0 0.0
      %340 = vmatpush1.msra.mxu0 0.0
      %341 = vmatprep.subr.mxu0 0.0
      %342 = vmatpush1.msra.mxu0 0.0
      %343 = vmatprep.subr.mxu0 0.0
      %344 = vmatpush1.msra.mxu0 0.0
      %345 = vmatprep.subr.mxu0 0.0
      %346 = vmatpush1.msra.mxu0 0.0
      %347 = vmatprep.subr.mxu0 0.0
      %348 = vmatpush1.msra.mxu0 0.0
      %349 = vmatprep.subr.mxu0 0.0
      %350 = vmatpush1.msra.mxu0 0.0
      %351 = vmatprep.subr.mxu0 0.0
      %352 = vmatpush1.msra.mxu0 0.0
      %353 = vmatprep.subr.mxu0 0.0
      %354 = vmatpush1.msra.mxu0 0.0
      %355 = vmatprep.subr.mxu0 0.0
      %356 = vmatpush1.msra.mxu0 0.0
      %357 = vmatprep.subr.mxu0 0.0
      %358 = vmatpush1.msra.mxu0 0.0
      %359 = vmatprep.subr.mxu0 0.0
      %360 = vmatpush1.msra.mxu0 0.0
      %361 = vmatprep.subr.mxu0 0.0
      %362 = vmatpush1.msra.mxu0 0.0
      %363 = vmatprep.subr.mxu0 0.0
      %364 = vmatpush1.msra.mxu0 0.0
      %365 = vmatprep.subr.mxu0 0.0
      %366 = vmatpush1.msra.mxu0 0.0
      %367 = vmatprep.mubr.f32.mxu0 0.0
      %368 = vmatmul.mubr.f32.gmra.mrb[0].mxu0 %v301
      %v369 = vpop.f32.mrb[0].mxu0
      %v370 = vadd.f32 0.0, %v369
      %v371 = vpop.f32.mrb[0].mxu0
      %372 = vdwg.mxu0
      %v373 = vrcp.pop 8.0
      %v374 = vmul.f32 %v370, %v373
      %v375 = vsub.f32 %v293, %v374
      %v376 = vmul.f32 %v375, %v375
      %v377 = vadd.f32 %v376, 0.0
      %v379 = vsel %vm299, %v377, 0
      %381 = vmatprep.subr.mxu0 0.0
      %382 = vmatpush1.msra.mxu0 %v295
      %383 = vmatprep.subr.mxu0 0.0
      %384 = vmatpush1.msra.mxu0 %v296
      %385 = vmatprep.subr.mxu0 0.0
      %386 = vmatpush1.msra.mxu0 %v297
      %387 = vmatprep.subr.mxu0 0.0
      %388 = vmatpush1.msra.mxu0 %v298
      %389 = vmatprep.subr.mxu0 0.0
      %390 = vmatpush1.msra.mxu0 0.0
      %391 = vmatprep.subr.mxu0 0.0
      %392 = vmatpush1.msra.mxu0 0.0
      %393 = vmatprep.subr.mxu0 0.0
      %394 = vmatpush1.msra.mxu0 0.0
      %395 = vmatprep.subr.mxu0 0.0
      %396 = vmatpush1.msra.mxu0 0.0
      %397 = vmatprep.subr.mxu0 0.0
      %398 = vmatpush1.msra.mxu0 0.0
      %399 = vmatprep.subr.mxu0 0.0
      %400 = vmatpush1.msra.mxu0 0.0
      %401 = vmatprep.subr.mxu0 0.0
      %402 = vmatpush1.msra.mxu0 0.0
      %403 = vmatprep.subr.mxu0 0.0
      %404 = vmatpush1.msra.mxu0 0.0
      %405 = vmatprep.subr.mxu0 0.0
      %406 = vmatpush1.msra.mxu0 0.0
      %407 = vmatprep.subr.mxu0 0.0
      %408 = vmatpush1.msra.mxu0 0.0
      %409 = vmatprep.subr.mxu0 0.0
      %410 = vmatpush1.msra.mxu0 0.0
      %411 = vmatprep.subr.mxu0 0.0
      %412 = vmatpush1.msra.mxu0 0.0
      %413 = vmatprep.subr.mxu0 0.0
      %414 = vmatpush1.msra.mxu0 0.0
      %415 = vmatprep.subr.mxu0 0.0
      %416 = vmatpush1.msra.mxu0 0.0
      %417 = vmatprep.subr.mxu0 0.0
      %418 = vmatpush1.msra.mxu0 0.0
      %419 = vmatprep.subr.mxu0 0.0
      %420 = vmatpush1.msra.mxu0 0.0
      %421 = vmatprep.subr.mxu0 0.0
      %422 = vmatpush1.msra.mxu0 0.0
      %423 = vmatprep.subr.mxu0 0.0
      %424 = vmatpush1.msra.mxu0 0.0
      %425 = vmatprep.subr.mxu0 0.0
      %426 = vmatpush1.msra.mxu0 0.0
      %427 = vmatprep.subr.mxu0 0.0
      %428 = vmatpush1.msra.mxu0 0.0
      %429 = vmatprep.subr.mxu0 0.0
      %430 = vmatpush1.msra.mxu0 0.0
      %431 = vmatprep.subr.mxu0 0.0
      %432 = vmatpush1.msra.mxu0 0.0
      %433 = vmatprep.subr.mxu0 0.0
      %434 = vmatpush1.msra.mxu0 0.0
      %435 = vmatprep.subr.mxu0 0.0
      %436 = vmatpush1.msra.mxu0 0.0
      %437 = vmatprep.subr.mxu0 0.0
      %438 = vmatpush1.msra.mxu0 0.0
      %439 = vmatprep.subr.mxu0 0.0
      %440 = vmatpush1.msra.mxu0 0.0
      %441 = vmatprep.subr.mxu0 0.0
      %442 = vmatpush1.msra.mxu0 0.0
      %443 = vmatprep.subr.mxu0 0.0
      %444 = vmatpush1.msra.mxu0 0.0
      %445 = vmatprep.mubr.f32.mxu0 0.0
      %446 = vmatmul.mubr.f32.gmra.mrb[0].mxu0 %v379
      %v447 = vpop.f32.mrb[0].mxu0
      %v448 = vadd.f32 0.0, %v447
      %v449 = vpop.f32.mrb[0].mxu0
      %450 = vdwg.mxu0
      %v451 = vmul.f32 %v448, %v373
      %v452 = vadd.f32 %v451, 1e-05
      %v453 = vrsqrt.pop %v452
      %v454 = vmul.f32 %v452, %v453
      %vm455 = vcmp.eq.f32.partialorder %v452, inf
      %v456 = vsel %vm455, %v452, %v454
      %vm457 = vcmp.eq.f32.partialorder %v452, 0.0
      %v458 = vand.u32 %v452, 2147483648
      %v459 = vsel %vm457, %v458, %v456
      %v460 = vrcp.pop %v459
      %v461 = vmul.f32 1.0, %v460
      %v462 = vld [vmem:[%s276] sm:$0x1]
      %v463 = vld [vmem:[%s279] sm:$0x1]
      %v464 = vmul.f32 %v461, %v462
      %v465 = vmul.f32 %v375, %v464
      %v466 = vadd.f32 %v465, %v463
      %vm467 = vcmask 253952
      %468 = vst.msk [vmem:[%s285] sm:$0x1] %vm467, %v466
      %v470 = vrot.slane %v459, 7
      %vm472 = vcmask 1040384
      %v473 = vsel %vm472, %v374, %v470
      %vm474 = vcmask 254976
      %475 = vst.msk [vmem:[%s292] sm:$0x3] %vm474, %v473
      %p476 = scmp.lt.s32.totalorder %s21, 1
      %s477 = scalar_select %p476, %s21, 1
      %p478 = scmp.lt.s32.totalorder %s22, 0
      %s479 = scalar_select %p478, %s22, 0
      %s480 = sadd.s32 %s479, %s477
      %s481 = scalar_lea.vmem %s4, %s480
      %p482 = scmp.lt.s32.totalorder %s21, 1
      %s483 = scalar_select %p482, %s21, 1
      %p484 = scmp.lt.s32.totalorder %s22, 0
      %s485 = scalar_select %p484, %s22, 0
      %s486 = sadd.s32 %s485, %s483
      %s487 = smul.addr %s486, 2
      %s488 = scalar_lea.vmem %s5, %s487
      // Predicated region
      $region37: #{revin_norm.1} parent=35 // pred_check
        %p489 = pneg %p150
      $region38: #{revin_norm.1} parent=35 // pred_check_branch
        %491 = sbr.rel (%p489) target = $region40
      $region39: #{revin_norm.1} parent=35 // pred_region
        _
      $region40: #{revin_norm.1} parent=35 // pred_fallthru
        _
      // Predicated region
      $region41: #{revin_norm.1} parent=35 // pred_check
        %p492 = pneg %p178
      $region42: #{revin_norm.1} parent=35 // pred_check_branch
        %494 = sbr.rel (%p492) target = $region44
      $region43: #{revin_norm.1} parent=35 // pred_region
        _
      $region44: #{revin_norm.1} parent=35 // pred_fallthru
        _
    $region36: #{revin_norm.1} parent=5 // pred_fallthru
      _
    %p495 = scmp.le.s32.totalorder 2, %s12
    // Predicated region
    $region45: #{revin_norm.1} parent=5 // pred_check
      %p496 = pneg %p495
    $region46: #{revin_norm.1} parent=5 // pred_check_branch
      %498 = sbr.rel (%p496) target = $region48
    $region47: #{revin_norm.1} parent=5 // pred_region
      %s499 = ssub.s32 %s12, 2
      // Predicated region
      $region49: #{revin_norm.1} parent=47 // pred_check
        %p500 = pneg %p156
      $region50: #{revin_norm.1} parent=47 // pred_check_branch
        %502 = sbr.rel (%p500) target = $region52
      $region51: #{revin_norm.1} parent=47 // pred_region
        %p503 = scmp.lt.s32.totalorder %s23, 1
        %s504 = scalar_select %p503, %s23, 1
        %p505 = scmp.lt.s32.totalorder %s24, 0
        %s506 = scalar_select %p505, %s24, 0
        %s507 = sadd.s32 %s506, %s504
        %s508 = scalar_lea.vmem %s4, %s507
      $region52: #{revin_norm.1} parent=47 // pred_fallthru
        _
      // Predicated region
      $region53: #{revin_norm.1} parent=47 // pred_check
        %p509 = pneg %p184
      $region54: #{revin_norm.1} parent=47 // pred_check_branch
        %511 = sbr.rel (%p509) target = $region56
      $region55: #{revin_norm.1} parent=47 // pred_region
        %p512 = scmp.lt.s32.totalorder %s23, 1
        %s513 = scalar_select %p512, %s23, 1
        %p514 = scmp.lt.s32.totalorder %s24, 0
        %s515 = scalar_select %p514, %s24, 0
        %s516 = sadd.s32 %s515, %s513
        %s517 = smul.addr %s516, 2
        %s518 = scalar_lea.vmem %s5, %s517
      $region56: #{revin_norm.1} parent=47 // pred_fallthru
        _
    $region48: #{revin_norm.1} parent=5 // pred_fallthru
      _
  $region6: #{revin_norm.1} parent=0 // loop_footer
    %s16 = sadd.s32 1, %s12
  $region7: #{revin_norm.1} parent=0 // loop_footer_branch
    %11 = sbr.rel target = $region3
  $region8: #{revin_norm.1} parent=0 // loop_exit
    _

</llo_original>
